<compile_context>
chip_gen: v7x
topology: tpu7x:2x2x1
jax: 0.10.0
libtpu: 0.0.40
codegen_flags: <defaults>
</compile_context>

<pallas_src>
import functools

import jax
import jax.numpy as jnp
from jax import lax
from jax.experimental import pallas as pl
from jax.experimental.pallas import tpu as pltpu

_EPS = 1e-8


def _round_up(a, b):
    return (a + b - 1) // b * b


def _feddecorr_kernel(x_ref, o_ref, gram_acc, s_acc, *, n_true, c_true, need_row_mask):
    k = pl.program_id(0)
    last = pl.num_programs(0) - 1

    @pl.when(k == 0)
    def _init():
        gram_acc[...] = jnp.zeros_like(gram_acc)
        s_acc[...] = jnp.zeros_like(s_acc)

    x = x_ref[...]  # (nb, cpad), streamed dtype (f32 or bf16)

    def _accum(v):
        # Raw Gram: contract the batch (sublane) axis directly -> x^T x on the
        # MXU with f32 accumulation; column sums on the VPU/XLU (nearly free).
        gram_acc[...] += lax.dot_general(
            v, v,
            dimension_numbers=(((0,), (0,)), ((), ())),
            preferred_element_type=jnp.float32,
        )
        s_acc[...] += jnp.sum(v.astype(jnp.float32), axis=0, keepdims=True)

    if need_row_mask:
        nb = x.shape[0]

        @pl.when(k == last)
        def _accum_masked():
            # Last block may extend past N: out-of-bounds rows are unspecified,
            # so zero them before touching the accumulators.
            rows = lax.broadcasted_iota(jnp.int32, x.shape, 0) + k * nb
            _accum(jnp.where(rows < n_true, x, jnp.zeros_like(x)))

        @pl.when(k != last)
        def _accum_full():
            _accum(x)
    else:
        _accum(x)

    @pl.when(k == last)
    def _finalize():
        g = gram_acc[...]          # (cpad, cpad) f32
        s = s_acc[...]             # (1, cpad)    f32 column sums of x
        cp = g.shape[0]

        def outer(a, b):           # (1, cpad) x (1, cpad) -> (cpad, cpad), K=1 matmul
            return lax.dot_general(
                a, b, dimension_numbers=(((0,), (0,)), ((), ())),
                preferred_element_type=jnp.float32)

        inv_n = jnp.float32(1.0 / n_true)
        gc = g - outer(s, s) * inv_n            # centered Gram; padded rows/cols stay 0

        rows = lax.broadcasted_iota(jnp.int32, (cp, cp), 0)
        cols = lax.broadcasted_iota(jnp.int32, (cp, cp), 1)
        dg = jnp.sum(jnp.where(rows == cols, gc, jnp.float32(0.0)),
                     axis=0, keepdims=True)     # diag(Gc), (1, cpad)
        dg = jnp.maximum(dg, jnp.float32(0.0))  # cancellation guard: var >= 0 (no NaN rsqrt)

        inv_nm1 = jnp.float32(1.0 / (n_true - 1))
        r = lax.rsqrt(jnp.float32(_EPS) + dg * inv_nm1)   # (1, cpad), EUP

        # corr = Gc scaled by the rank-1 factor r_i * r_j; fuse the square.
        total_sq = jnp.sum(jnp.square(gc * outer(r, r)))

        # Diagonal of corr analytically (padded columns give exactly 0).
        diag_corr = dg * (r * r)
        diag_sq = jnp.sum(jnp.square(diag_corr))

        scale = jnp.float32(1.0 / (c_true * (c_true - 1) * n_true))
        o_ref[0, 0] = (total_sq - diag_sq) * scale


def feddecorr_loss(x, *, block_rows=None):
    """Pallas TPU implementation of FedDecorrLoss.forward for a (N, C) input."""
    x = jnp.asarray(x)
    N, C = x.shape
    if N == 1:
        return jnp.float32(0.0)        # PyTorch returns plain 0.0
    if C < 2:
        return jnp.float32(jnp.nan)    # off-diagonal of a 1x1 matrix is empty -> nan

    # Stream dtype: keep bf16 inputs in bf16 (halves DMA bytes / input VMEM,
    # bf16-native MXU); everything else streams as f32. Accumulation is f32.
    stream_dtype = jnp.bfloat16 if x.dtype == jnp.bfloat16 else jnp.float32
    xs = x.astype(stream_dtype)
    in_bytes = jnp.dtype(stream_dtype).itemsize

    # Lane dim: pad to a 128 multiple only when C is not already aligned.
    cpad = _round_up(C, 128)
    if cpad != C:
        xs = jnp.pad(xs, ((0, 0), (0, cpad - C)))

    # Row block: target ~2 MiB per input buffer, balance across blocks, and
    # never pad N up to a block multiple (ragged tail masked in-kernel).
    sub = 16 if in_bytes == 2 else 8
    bytes_per_row = cpad * in_bytes
    if block_rows is None:
        target = max(256, min(2048, (2 << 20) // bytes_per_row))
    else:
        target = max(1, int(block_rows))
    num_blocks = max(1, -(-N // target))
    nb = _round_up(-(-N // num_blocks), sub)
    grid_steps = -(-N // nb)
    need_row_mask = (N % nb) != 0

    kernel = functools.partial(
        _feddecorr_kernel, n_true=N, c_true=C, need_row_mask=need_row_mask)

    # VMEM budget: double-buffered input block + Gram accumulator + column-sum
    # scratch + finalize temporaries; cap per generation.
    vmem_need = 2 * nb * cpad * in_bytes + 4 * cpad * cpad * 4 + (2 << 20)
    try:
        phys_vmem = int(pltpu.get_tpu_info().vmem_capacity_bytes)
    except Exception:
        phys_vmem = 64 << 20            # conservative (v7x) fallback
    vmem_cap = max(16 << 20, min(phys_vmem - (12 << 20), 100 << 20))
    vmem_limit = int(min(max(vmem_need, 16 << 20), vmem_cap))
    # TODO(synk): for very large C (vmem_need > vmem_cap) switch strategy (tile
    # Gram columns over a second grid axis / finalize in XLA) and add the v7x
    # two-TensorCore parallel split; single-core resident-Gram path only here.

    cost = pl.CostEstimate(
        flops=2 * grid_steps * nb * cpad * cpad,
        transcendentals=cpad,
        bytes_accessed=N * cpad * in_bytes + cpad * cpad * 4,
    )

    out = pl.pallas_call(
        kernel,
        out_shape=jax.ShapeDtypeStruct((1, 1), jnp.float32),
        grid=(grid_steps,),
        in_specs=[pl.BlockSpec((nb, cpad), lambda k: (k, 0))],
        out_specs=pl.BlockSpec(memory_space=pltpu.MemorySpace.SMEM),
        scratch_shapes=[
            pltpu.VMEM((cpad, cpad), jnp.float32),   # Gram accumulator
            pltpu.VMEM((1, cpad), jnp.float32),      # column-sum accumulator
        ],
        compiler_params=pltpu.CompilerParams(
            dimension_semantics=("arbitrary",),
            vmem_limit_bytes=vmem_limit,
        ),
        cost_estimate=cost,
    )(xs)
    return out[0, 0]


def _reference(x):
    """Pure-JAX reference mirroring the PyTorch module (two-pass, for checking)."""
    x = jnp.asarray(x, jnp.float32)
    N, C = x.shape
    if N == 1:
        return jnp.float32(0.0)
    xc = x - jnp.mean(x, axis=0, keepdims=True)
    var = jnp.var(xc, axis=0, keepdims=True, ddof=1)
    xn = xc / jnp.sqrt(_EPS + var)
    corr = xn.T @ xn
    off_sum = jnp.sum(corr * corr) - jnp.sum(jnp.diag(corr) ** 2)
    return (off_sum / (C * (C - 1))) / N


if __name__ == "__main__":
    key = jax.random.PRNGKey(0)
    k1, k2, k3 = jax.random.split(key, 3)

    # Small primary test matching the module's (N, C) feature input.
    N, C = 8, 32
    x = jax.random.normal(k1, (N, C), dtype=jnp.float32)
    loss = jax.block_until_ready(feddecorr_loss(x))
    ref = _reference(x)
    assert jnp.allclose(loss, ref, rtol=1e-4, atol=1e-6), (loss, ref)

    # Ragged N + non-lane-aligned C: multi-block grid, tail-row masking, lane pad.
    N2, C2 = 21, 40
    x2 = jax.random.normal(k2, (N2, C2), dtype=jnp.float32)
    loss2 = jax.block_until_ready(feddecorr_loss(x2, block_rows=8))
    ref2 = _reference(x2)
    assert jnp.allclose(loss2, ref2, rtol=1e-4, atol=1e-6), (loss2, ref2)

    # Lane-aligned C (no padded HBM copy) + bf16 streaming path.
    N3, C3 = 16, 128
    x3 = jax.random.normal(k3, (N3, C3), dtype=jnp.float32).astype(jnp.bfloat16)
    loss3 = jax.block_until_ready(feddecorr_loss(x3))
    ref3 = _reference(x3.astype(jnp.float32))
    assert jnp.allclose(loss3, ref3, rtol=2e-2, atol=1e-4), (loss3, ref3)

    print("KERNEL_OK")
</pallas_src>

<mosaic_0001>
module attributes {stable_mosaic.version = 11 : i64} {
  func.func @_feddecorr_kernel(%arg0: i32, %arg1: memref<8x128xf32, #tpu.memory_space<vmem>>, %arg2: memref<1x1xf32, #tpu.memory_space<smem>>, %arg3: memref<128x128xf32, #tpu.memory_space<vmem>>, %arg4: memref<1x128xf32, #tpu.memory_space<vmem>>) attributes {dimension_semantics = [#tpu.dimension_semantics<arbitrary>], iteration_bounds = array<i64: 1>, scalar_prefetch = 0 : i64, scratch_operands = 2 : i64, tpu.core_type = #tpu.core_type<tc>, window_params = [{transform_indices = @transform_0, window_bounds = array<i64: 8, 128>}, {transform_indices = @transform_1, window_bounds = array<i64: 1, 1>}]} {
    %c0_i32 = arith.constant 0 : i32
    %0 = arith.cmpi eq, %arg0, %c0_i32 : i32
    %1 = arith.extui %0 : i1 to i32
    %c0_i32_0 = arith.constant 0 : i32
    %2 = arith.cmpi ne, %1, %c0_i32_0 : i32
    scf.if %2 {
      %cst_13 = arith.constant 0.000000e+00 : f32
      %16 = vector.broadcast %cst_13 : f32 to vector<128x128xf32>
      %c0_14 = arith.constant 0 : index
      %c0_15 = arith.constant 0 : index
      %17 = vector.load %arg3[%c0_14, %c0_15] : memref<128x128xf32, #tpu.memory_space<vmem>>, vector<128x128xf32>
      tpu.vector_store %arg3[%c0_14, %c0_15], %16 {strides = array<i32>} : memref<128x128xf32, #tpu.memory_space<vmem>>, vector<128x128xf32>,
      %cst_16 = arith.constant 0.000000e+00 : f32
      %18 = vector.broadcast %cst_16 : f32 to vector<1x128xf32>
      %c0_17 = arith.constant 0 : index
      %c0_18 = arith.constant 0 : index
      %19 = vector.load %arg4[%c0_17, %c0_18] : memref<1x128xf32, #tpu.memory_space<vmem>>, vector<1x128xf32>
      tpu.vector_store %arg4[%c0_17, %c0_18], %18 {strides = array<i32>} : memref<1x128xf32, #tpu.memory_space<vmem>>, vector<1x128xf32>,
    } else {
    }
    %c0 = arith.constant 0 : index
    %c0_1 = arith.constant 0 : index
    %3 = vector.load %arg1[%c0, %c0_1] : memref<8x128xf32, #tpu.memory_space<vmem>>, vector<8x128xf32>
    %c0_2 = arith.constant 0 : index
    %c0_3 = arith.constant 0 : index
    %4 = vector.load %arg3[%c0_2, %c0_3] : memref<128x128xf32, #tpu.memory_space<vmem>>, vector<128x128xf32>
    %cst = arith.constant dense<0.000000e+00> : vector<128x128xf32>
    %5 = tpu.matmul %3, %3, %cst {dimension_numbers = #tpu.dot_dimension_numbers<[0], [0], [1], [1], [0, 1, 1, 1], [], []>} : vector<8x128xf32>, vector<8x128xf32>, vector<128x128xf32> -> vector<128x128xf32>
    %6 = arith.addf %4, %5 : vector<128x128xf32>
    %c0_4 = arith.constant 0 : index
    %c0_5 = arith.constant 0 : index
    %7 = vector.load %arg3[%c0_4, %c0_5] : memref<128x128xf32, #tpu.memory_space<vmem>>, vector<128x128xf32>
    tpu.vector_store %arg3[%c0_4, %c0_5], %6 {strides = array<i32>} : memref<128x128xf32, #tpu.memory_space<vmem>>, vector<128x128xf32>,
    %c0_6 = arith.constant 0 : index
    %c0_7 = arith.constant 0 : index
    %8 = vector.load %arg4[%c0_6, %c0_7] : memref<1x128xf32, #tpu.memory_space<vmem>>, vector<1x128xf32>
    %cst_8 = arith.constant dense<0.000000e+00> : vector<128xf32>
    %9 = vector.multi_reduction <add>, %3, %cst_8 [0] : vector<8x128xf32> to vector<128xf32>
    %10 = vector.shape_cast %9 : vector<128xf32> to vector<1x128xf32>
    %11 = arith.addf %8, %10 : vector<1x128xf32>
    %c0_9 = arith.constant 0 : index
    %c0_10 = arith.constant 0 : index
    %12 = vector.load %arg4[%c0_9, %c0_10] : memref<1x128xf32, #tpu.memory_space<vmem>>, vector<1x128xf32>
    tpu.vector_store %arg4[%c0_9, %c0_10], %11 {strides = array<i32>} : memref<1x128xf32, #tpu.memory_space<vmem>>, vector<1x128xf32>,
    %c0_i32_11 = arith.constant 0 : i32
    %13 = arith.cmpi eq, %arg0, %c0_i32_11 : i32
    %14 = arith.extui %13 : i1 to i32
    %c0_i32_12 = arith.constant 0 : i32
    %15 = arith.cmpi ne, %14, %c0_i32_12 : i32
    scf.if %15 {
      %c0_13 = arith.constant 0 : index
      %c0_14 = arith.constant 0 : index
      %16 = vector.load %arg3[%c0_13, %c0_14] : memref<128x128xf32, #tpu.memory_space<vmem>>, vector<128x128xf32>
      %c0_15 = arith.constant 0 : index
      %c0_16 = arith.constant 0 : index
      %17 = vector.load %arg4[%c0_15, %c0_16] : memref<1x128xf32, #tpu.memory_space<vmem>>, vector<1x128xf32>
      %cst_17 = arith.constant dense<0.000000e+00> : vector<128x128xf32>
      %18 = tpu.matmul %17, %17, %cst_17 {dimension_numbers = #tpu.dot_dimension_numbers<[0], [0], [1], [1], [0, 1, 1, 1], [], []>} : vector<1x128xf32>, vector<1x128xf32>, vector<128x128xf32> -> vector<128x128xf32>
      %cst_18 = arith.constant 1.250000e-01 : f32
      %19 = vector.broadcast %cst_18 : f32 to vector<128x128xf32>
      %20 = arith.mulf %18, %19 : vector<128x128xf32>
      %21 = arith.subf %16, %20 : vector<128x128xf32>
      %22 = tpu.iota {dimensions = array<i32: 0>} : vector<128x128xi32>
      %23 = tpu.iota {dimensions = array<i32: 1>} : vector<128x128xi32>
      %24 = arith.cmpi eq, %22, %23 : vector<128x128xi32>
      %cst_19 = arith.constant 0.000000e+00 : f32
      %25 = vector.broadcast %cst_19 : f32 to vector<128x128xf32>
      %26 = arith.select %24, %21, %25 : vector<128x128xi1>, vector<128x128xf32>
      %cst_20 = arith.constant dense<0.000000e+00> : vector<128xf32>
      %27 = vector.multi_reduction <add>, %26, %cst_20 [0] : vector<128x128xf32> to vector<128xf32>
      %28 = vector.shape_cast %27 : vector<128xf32> to vector<1x128xf32>
      %cst_21 = arith.constant 0.000000e+00 : f32
      %29 = vector.broadcast %cst_21 : f32 to vector<1x128xf32>
      %30 = arith.maximumf %28, %29 : vector<1x128xf32>
      %cst_22 = arith.constant 0.142857149 : f32
      %31 = vector.broadcast %cst_22 : f32 to vector<1x128xf32>
      %32 = arith.mulf %30, %31 : vector<1x128xf32>
      %cst_23 = arith.constant 9.99999993E-9 : f32
      %33 = vector.broadcast %cst_23 : f32 to vector<1x128xf32>
      %34 = arith.addf %33, %32 : vector<1x128xf32>
      %35 = math.rsqrt %34 : vector<1x128xf32>
      %cst_24 = arith.constant dense<0.000000e+00> : vector<128x128xf32>
      %36 = tpu.matmul %35, %35, %cst_24 {dimension_numbers = #tpu.dot_dimension_numbers<[0], [0], [1], [1], [0, 1, 1, 1], [], []>} : vector<1x128xf32>, vector<1x128xf32>, vector<128x128xf32> -> vector<128x128xf32>
      %37 = arith.mulf %21, %36 : vector<128x128xf32>
      %38 = arith.mulf %37, %37 : vector<128x128xf32>
      %39 = vector.shape_cast %38 : vector<128x128xf32> to vector<1x128x128xf32>
      %cst_25 = arith.constant dense<0.000000e+00> : vector<1xf32>
      %40 = vector.multi_reduction <add>, %39, %cst_25 [1, 2] : vector<1x128x128xf32> to vector<1xf32>
      %41 = vector.shape_cast %40 : vector<1xf32> to vector<1x1x1xf32>
      %42 = vector.extract %41[0, 0, 0] : f32 from vector<1x1x1xf32>
      %43 = arith.mulf %35, %35 : vector<1x128xf32>
      %44 = arith.mulf %30, %43 : vector<1x128xf32>
      %45 = arith.mulf %44, %44 : vector<1x128xf32>
      %46 = vector.shape_cast %45 : vector<1x128xf32> to vector<1x1x128xf32>
      %cst_26 = arith.constant dense<0.000000e+00> : vector<1xf32>
      %47 = vector.multi_reduction <add>, %46, %cst_26 [1, 2] : vector<1x1x128xf32> to vector<1xf32>
      %48 = vector.shape_cast %47 : vector<1xf32> to vector<1x1x1xf32>
      %49 = vector.extract %48[0, 0, 0] : f32 from vector<1x1x1xf32>
      %50 = arith.subf %42, %49 : f32
      %cst_27 = arith.constant 1.26008061E-4 : f32
      %51 = arith.mulf %50, %cst_27 : f32
      %c0_28 = arith.constant 0 : index
      %c0_29 = arith.constant 0 : index
      %52 = memref.load %arg2[%c0_28, %c0_29] : memref<1x1xf32, #tpu.memory_space<smem>>
      memref.store %51, %arg2[%c0_28, %c0_29] : memref<1x1xf32, #tpu.memory_space<smem>>
    } else {
    }
    return
  }
  func.func @transform_0(%arg0: i32) -> (i32, i32) {
    %c0_i32 = arith.constant 0 : i32
    %c0_i32_0 = arith.constant 0 : i32
    return %arg0, %c0_i32 : i32, i32
  }
  func.func @transform_1(%arg0: i32) -> (i32, i32) {
    %c0_i32 = arith.constant 0 : i32
    %c0_i32_0 = arith.constant 0 : i32
    %c0_i32_1 = arith.constant 0 : i32
    return %c0_i32, %c0_i32_0 : i32, i32
  }
}

</mosaic_0001>

<llo_original>
// kernel: tpu_custom_call.1
$region0: #{tpu_custom_call.1}
  #allocation0 [shape = 'u32[]', space=smem, size = 0x4, offset = 0x4, fixed_abs, tag = 'smem constant byte address 0x4 - core index']
  #allocation1 [shape = 'u32[144,128]{1,0:T(1,128)}', space=vmem, size = 0x12000, scoped, tag = 'internal scratch']
  #allocation2 [shape = 'f32[128,128]{1,0:T(8,128)}', space=vmem, size = 0x10000, scoped, tag = 'scratch operand']
  #allocation3 [shape = 'f32[1,128]{1,0:T(1,128)}', space=vmem, size = 0x200, scoped, tag = 'scratch operand']
  %s0 = inlined_call_operand.hbm [shape: f32[8,128], index: 0, kind: input, shape index: {}]
  %s1 = inlined_call_operand.hbm [shape: f32[1,1], index: 1, kind: output, shape index: {}]
  %s2 = sld [smem:[#allocation0]]
  $region26: #{tpu_custom_call.1} parent=0
    _
  %s4 = ssub.s32 1, %s2
  %s5 = scalar_select 0, %s4, %s2
  $region1: #{tpu_custom_call.1} parent=0
    #allocation4 [shape = 'u8[4096]{0}', space=vmem, size = 0x1000, scoped, tag = 'input window, operand 0, single buffered']
    #allocation5 [shape = 's32[1]{0}', space=sflag, size = 0x4, scoped, tag = 'scoped memory for tpu_custom_call.1']
    #allocation6 [shape = 's32[1]{0}', space=sflag, size = 0x4, scoped, tag = 'scoped memory for tpu_custom_call.1']
    #allocation7 [shape = 'u8[512]{0}', space=smem, size = 0x200, scoped, tag = 'output window, operand 0, single buffered']
    %6 = vsyncpa [#allocation5], 0
    %7 = vsyncpa [#allocation6], 0
    // Predicated region
    $region2: #{tpu_custom_call.1} parent=1 // pred_check
      _
    $region3: #{tpu_custom_call.1} parent=1 // pred_check_branch
      %9 = sbr.rel (0) target = $region5
    $region4: #{tpu_custom_call.1} parent=1 // pred_region
      %s11 = ssub.s32 128, 128
      %12 = vsyncadd [#allocation5], %s11
      %s14 = sshll.u32 [#allocation4], 4
      %s15 = int_to_ptr.vmem [resolvable:$true] %s14
      %17 = dma.hbm_to_vmem [thread:$0]  %s0, 128, %s15, [#allocation5]
    $region5: #{tpu_custom_call.1} parent=1 // pred_fallthru
      _
    // Predicated region
    $region6: #{tpu_custom_call.1} parent=1 // pred_check
      _
    $region7: #{tpu_custom_call.1} parent=1 // pred_check_branch
      %19 = sbr.rel (0) target = $region9
    $region8: #{tpu_custom_call.1} parent=1 // pred_region
      %20 = dma.done [#allocation5], 128
    $region9: #{tpu_custom_call.1} parent=1 // pred_fallthru
      _
    %p21 = scmp.eq.s32.totalorder 0, 0
    // Predicated region
    $region10: #{tpu_custom_call.1} parent=1 // pred_check
      %p22 = pneg %p21
    $region11: #{tpu_custom_call.1} parent=1 // pred_check_branch
      %24 = sbr.rel (%p22) target = $region13
    $region12: #{tpu_custom_call.1} parent=1 // pred_region
      %25 = vst [vmem:[#allocation2] sm:$0xff] 0.0
      %26 = vst [vmem:[#allocation2 + $0x8] sm:$0xff] 0.0
      %27 = vst [vmem:[#allocation2 + $0x10] sm:$0xff] 0.0
      %28 = vst [vmem:[#allocation2 + $0x18] sm:$0xff] 0.0
      %29 = vst [vmem:[#allocation2 + $0x20] sm:$0xff] 0.0
      %30 = vst [vmem:[#allocation2 + $0x28] sm:$0xff] 0.0
      %31 = vst [vmem:[#allocation2 + $0x30] sm:$0xff] 0.0
      %32 = vst [vmem:[#allocation2 + $0x38] sm:$0xff] 0.0
      %33 = vst [vmem:[#allocation2 + $0x40] sm:$0xff] 0.0
      %34 = vst [vmem:[#allocation2 + $0x48] sm:$0xff] 0.0
      %35 = vst [vmem:[#allocation2 + $0x50] sm:$0xff] 0.0
      %36 = vst [vmem:[#allocation2 + $0x58] sm:$0xff] 0.0
      %37 = vst [vmem:[#allocation2 + $0x60] sm:$0xff] 0.0
      %38 = vst [vmem:[#allocation2 + $0x68] sm:$0xff] 0.0
      %39 = vst [vmem:[#allocation2 + $0x70] sm:$0xff] 0.0
      %40 = vst [vmem:[#allocation2 + $0x78] sm:$0xff] 0.0
      %41 = vst [vmem:[#allocation3] sm:$0x1] 0.0
    $region13: #{tpu_custom_call.1} parent=1 // pred_fallthru
      _
    %v42 = vld [vmem:[#allocation4] sm:$0xff]
    %v43 = vld [vmem:[#allocation2] sm:$0xff]
    %v44 = vld [vmem:[#allocation2 + $0x8] sm:$0xff]
    %v45 = vld [vmem:[#allocation2 + $0x10] sm:$0xff]
    %v46 = vld [vmem:[#allocation2 + $0x18] sm:$0xff]
    %v47 = vld [vmem:[#allocation2 + $0x20] sm:$0xff]
    %v48 = vld [vmem:[#allocation2 + $0x28] sm:$0xff]
    %v49 = vld [vmem:[#allocation2 + $0x30] sm:$0xff]
    %v50 = vld [vmem:[#allocation2 + $0x38] sm:$0xff]
    %v51 = vld [vmem:[#allocation2 + $0x40] sm:$0xff]
    %v52 = vld [vmem:[#allocation2 + $0x48] sm:$0xff]
    %v53 = vld [vmem:[#allocation2 + $0x50] sm:$0xff]
    %v54 = vld [vmem:[#allocation2 + $0x58] sm:$0xff]
    %v55 = vld [vmem:[#allocation2 + $0x60] sm:$0xff]
    %v56 = vld [vmem:[#allocation2 + $0x68] sm:$0xff]
    %v57 = vld [vmem:[#allocation2 + $0x70] sm:$0xff]
    %v58 = vld [vmem:[#allocation2 + $0x78] sm:$0xff]
    %59 = vxpose.xlu0.b32.start [1/16] %v42, 128
    %60 = vxpose.xlu0.b32.cont [2/16] 0.0, 128
    %61 = vxpose.xlu0.b32.cont [3/16] 0.0, 128
    %62 = vxpose.xlu0.b32.cont [4/16] 0.0, 128
    %63 = vxpose.xlu0.b32.cont [5/16] 0.0, 128
    %64 = vxpose.xlu0.b32.cont [6/16] 0.0, 128
    %65 = vxpose.xlu0.b32.cont [7/16] 0.0, 128
    %66 = vxpose.xlu0.b32.cont [8/16] 0.0, 128
    %67 = vxpose.xlu0.b32.cont [9/16] 0.0, 128
    %68 = vxpose.xlu0.b32.cont [10/16] 0.0, 128
    %69 = vxpose.xlu0.b32.cont [11/16] 0.0, 128
    %70 = vxpose.xlu0.b32.cont [12/16] 0.0, 128
    %71 = vxpose.xlu0.b32.cont [13/16] 0.0, 128
    %72 = vxpose.xlu0.b32.cont [14/16] 0.0, 128
    %73 = vxpose.xlu0.b32.cont [15/16] 0.0, 128
    %74 = vxpose.xlu0.b32.end [16/16] 0.0, 128
    %v75 = vpop.trf.xlu0
    %v76 = vpop.trf.xlu0
    %v77 = vpop.trf.xlu0
    %v78 = vpop.trf.xlu0
    %v79 = vpop.trf.xlu0
    %v80 = vpop.trf.xlu0
    %v81 = vpop.trf.xlu0
    %v82 = vpop.trf.xlu0
    %v83 = vpop.trf.xlu0
    %v84 = vpop.trf.xlu0
    %v85 = vpop.trf.xlu0
    %v86 = vpop.trf.xlu0
    %v87 = vpop.trf.xlu0
    %v88 = vpop.trf.xlu0
    %v89 = vpop.trf.xlu0
    %v90 = vpop.trf.xlu0
    %vm91 = vcmask 64512
    %v93 = vsel %vm91, %v75, 0
    %v96 = vsel %vm91, %v76, 0
    %v99 = vsel %vm91, %v77, 0
    %v102 = vsel %vm91, %v78, 0
    %v105 = vsel %vm91, %v79, 0
    %v108 = vsel %vm91, %v80, 0
    %v111 = vsel %vm91, %v81, 0
    %v114 = vsel %vm91, %v82, 0
    %v117 = vsel %vm91, %v83, 0
    %v120 = vsel %vm91, %v84, 0
    %v123 = vsel %vm91, %v85, 0
    %v126 = vsel %vm91, %v86, 0
    %v129 = vsel %vm91, %v87, 0
    %v132 = vsel %vm91, %v88, 0
    %v135 = vsel %vm91, %v89, 0
    %v138 = vsel %vm91, %v90, 0
    %140 = vmatprep.subr.mxu0 0.0
    %141 = vmatpush1.msra.mxu0 %v42
    %142 = vmatprep.subr.mxu0 0.0
    %143 = vmatpush1.msra.mxu0 0.0
    %144 = vmatprep.subr.mxu0 0.0
    %145 = vmatpush1.msra.mxu0 0.0
    %146 = vmatprep.subr.mxu0 0.0
    %147 = vmatpush1.msra.mxu0 0.0
    %148 = vmatprep.subr.mxu0 0.0
    %149 = vmatpush1.msra.mxu0 0.0
    %150 = vmatprep.subr.mxu0 0.0
    %151 = vmatpush1.msra.mxu0 0.0
    %152 = vmatprep.subr.mxu0 0.0
    %153 = vmatpush1.msra.mxu0 0.0
    %154 = vmatprep.subr.mxu0 0.0
    %155 = vmatpush1.msra.mxu0 0.0
    %156 = vmatprep.subr.mxu0 0.0
    %157 = vmatpush1.msra.mxu0 0.0
    %158 = vmatprep.subr.mxu0 0.0
    %159 = vmatpush1.msra.mxu0 0.0
    %160 = vmatprep.subr.mxu0 0.0
    %161 = vmatpush1.msra.mxu0 0.0
    %162 = vmatprep.subr.mxu0 0.0
    %163 = vmatpush1.msra.mxu0 0.0
    %164 = vmatprep.subr.mxu0 0.0
    %165 = vmatpush1.msra.mxu0 0.0
    %166 = vmatprep.subr.mxu0 0.0
    %167 = vmatpush1.msra.mxu0 0.0
    %168 = vmatprep.subr.mxu0 0.0
    %169 = vmatpush1.msra.mxu0 0.0
    %170 = vmatprep.subr.mxu0 0.0
    %171 = vmatpush1.msra.mxu0 0.0
    %172 = vmatprep.subr.mxu0 0.0
    %173 = vmatpush1.msra.mxu0 0.0
    %174 = vmatprep.subr.mxu0 0.0
    %175 = vmatpush1.msra.mxu0 0.0
    %176 = vmatprep.subr.mxu0 0.0
    %177 = vmatpush1.msra.mxu0 0.0
    %178 = vmatprep.subr.mxu0 0.0
    %179 = vmatpush1.msra.mxu0 0.0
    %180 = vmatprep.subr.mxu0 0.0
    %181 = vmatpush1.msra.mxu0 0.0
    %182 = vmatprep.subr.mxu0 0.0
    %183 = vmatpush1.msra.mxu0 0.0
    %184 = vmatprep.subr.mxu0 0.0
    %185 = vmatpush1.msra.mxu0 0.0
    %186 = vmatprep.subr.mxu0 0.0
    %187 = vmatpush1.msra.mxu0 0.0
    %188 = vmatprep.subr.mxu0 0.0
    %189 = vmatpush1.msra.mxu0 0.0
    %190 = vmatprep.subr.mxu0 0.0
    %191 = vmatpush1.msra.mxu0 0.0
    %192 = vmatprep.subr.mxu0 0.0
    %193 = vmatpush1.msra.mxu0 0.0
    %194 = vmatprep.subr.mxu0 0.0
    %195 = vmatpush1.msra.mxu0 0.0
    %196 = vmatprep.subr.mxu0 0.0
    %197 = vmatpush1.msra.mxu0 0.0
    %198 = vmatprep.subr.mxu0 0.0
    %199 = vmatpush1.msra.mxu0 0.0
    %200 = vmatprep.subr.mxu0 0.0
    %201 = vmatpush1.msra.mxu0 0.0
    %202 = vmatprep.subr.mxu0 0.0
    %203 = vmatpush1.msra.mxu0 0.0
    %204 = vmatprep.mubr.f32.mxu0 0.0
    %205 = vmatmul.mubr.f32.gmra.mrb[0].mxu0 %v93
    %v206 = vpop.f32.mrb[0].mxu0
    %v207 = vadd.f32 0.0, %v206
    %v208 = vpop.f32.mrb[0].mxu0
    %209 = vmatprep.mubr.f32.mxu0 0.0
    %210 = vmatmul.mubr.f32.gmra.mrb[0].mxu0 %v96
    %v211 = vpop.f32.mrb[0].mxu0
    %v212 = vadd.f32 0.0, %v211
    %v213 = vpop.f32.mrb[0].mxu0
    %214 = vmatprep.mubr.f32.mxu0 0.0
    %215 = vmatmul.mubr.f32.gmra.mrb[0].mxu0 %v99
    %v216 = vpop.f32.mrb[0].mxu0
    %v217 = vadd.f32 0.0, %v216
    %v218 = vpop.f32.mrb[0].mxu0
    %219 = vmatprep.mubr.f32.mxu0 0.0
    %220 = vmatmul.mubr.f32.gmra.mrb[0].mxu0 %v102
    %v221 = vpop.f32.mrb[0].mxu0
    %v222 = vadd.f32 0.0, %v221
    %v223 = vpop.f32.mrb[0].mxu0
    %224 = vmatprep.mubr.f32.mxu0 0.0
    %225 = vmatmul.mubr.f32.gmra.mrb[0].mxu0 %v105
    %v226 = vpop.f32.mrb[0].mxu0
    %v227 = vadd.f32 0.0, %v226
    %v228 = vpop.f32.mrb[0].mxu0
    %229 = vmatprep.mubr.f32.mxu0 0.0
    %230 = vmatmul.mubr.f32.gmra.mrb[0].mxu0 %v108
    %v231 = vpop.f32.mrb[0].mxu0
    %v232 = vadd.f32 0.0, %v231
    %v233 = vpop.f32.mrb[0].mxu0
    %234 = vmatprep.mubr.f32.mxu0 0.0
    %235 = vmatmul.mubr.f32.gmra.mrb[0].mxu0 %v111
    %v236 = vpop.f32.mrb[0].mxu0
    %v237 = vadd.f32 0.0, %v236
    %v238 = vpop.f32.mrb[0].mxu0
    %239 = vmatprep.mubr.f32.mxu0 0.0
    %240 = vmatmul.mubr.f32.gmra.mrb[0].mxu0 %v114
    %v241 = vpop.f32.mrb[0].mxu0
    %v242 = vadd.f32 0.0, %v241
    %v243 = vpop.f32.mrb[0].mxu0
    %244 = vmatprep.mubr.f32.mxu0 0.0
    %245 = vmatmul.mubr.f32.gmra.mrb[0].mxu0 %v117
    %v246 = vpop.f32.mrb[0].mxu0
    %v247 = vadd.f32 0.0, %v246
    %v248 = vpop.f32.mrb[0].mxu0
    %249 = vmatprep.mubr.f32.mxu0 0.0
    %250 = vmatmul.mubr.f32.gmra.mrb[0].mxu0 %v120
    %v251 = vpop.f32.mrb[0].mxu0
    %v252 = vadd.f32 0.0, %v251
    %v253 = vpop.f32.mrb[0].mxu0
    %254 = vmatprep.mubr.f32.mxu0 0.0
    %255 = vmatmul.mubr.f32.gmra.mrb[0].mxu0 %v123
    %v256 = vpop.f32.mrb[0].mxu0
    %v257 = vadd.f32 0.0, %v256
    %v258 = vpop.f32.mrb[0].mxu0
    %259 = vmatprep.mubr.f32.mxu0 0.0
    %260 = vmatmul.mubr.f32.gmra.mrb[0].mxu0 %v126
    %v261 = vpop.f32.mrb[0].mxu0
    %v262 = vadd.f32 0.0, %v261
    %v263 = vpop.f32.mrb[0].mxu0
    %264 = vmatprep.mubr.f32.mxu0 0.0
    %265 = vmatmul.mubr.f32.gmra.mrb[0].mxu0 %v129
    %v266 = vpop.f32.mrb[0].mxu0
    %v267 = vadd.f32 0.0, %v266
    %v268 = vpop.f32.mrb[0].mxu0
    %269 = vmatprep.mubr.f32.mxu0 0.0
    %270 = vmatmul.mubr.f32.gmra.mrb[0].mxu0 %v132
    %v271 = vpop.f32.mrb[0].mxu0
    %v272 = vadd.f32 0.0, %v271
    %v273 = vpop.f32.mrb[0].mxu0
    %274 = vmatprep.mubr.f32.mxu0 0.0
    %275 = vmatmul.mubr.f32.gmra.mrb[0].mxu0 %v135
    %v276 = vpop.f32.mrb[0].mxu0
    %v277 = vadd.f32 0.0, %v276
    %v278 = vpop.f32.mrb[0].mxu0
    %279 = vmatprep.mubr.f32.mxu0 0.0
    %280 = vmatmul.mubr.f32.gmra.mrb[0].mxu0 %v138
    %v281 = vpop.f32.mrb[0].mxu0
    %v282 = vadd.f32 0.0, %v281
    %v283 = vpop.f32.mrb[0].mxu0
    %284 = vdwg.mxu0
    %v285 = vadd.f32 %v43, %v207
    %v286 = vadd.f32 %v44, %v212
    %v287 = vadd.f32 %v45, %v217
    %v288 = vadd.f32 %v46, %v222
    %v289 = vadd.f32 %v47, %v227
    %v290 = vadd.f32 %v48, %v232
    %v291 = vadd.f32 %v49, %v237
    %v292 = vadd.f32 %v50, %v242
    %v293 = vadd.f32 %v51, %v247
    %v294 = vadd.f32 %v52, %v252
    %v295 = vadd.f32 %v53, %v257
    %v296 = vadd.f32 %v54, %v262
    %v297 = vadd.f32 %v55, %v267
    %v298 = vadd.f32 %v56, %v272
    %v299 = vadd.f32 %v57, %v277
    %v300 = vadd.f32 %v58, %v282
    %301 = vst [vmem:[#allocation2] sm:$0xff] %v285
    %302 = vst [vmem:[#allocation2 + $0x8] sm:$0xff] %v286
    %303 = vst [vmem:[#allocation2 + $0x10] sm:$0xff] %v287
    %304 = vst [vmem:[#allocation2 + $0x18] sm:$0xff] %v288
    %305 = vst [vmem:[#allocation2 + $0x20] sm:$0xff] %v289
    %306 = vst [vmem:[#allocation2 + $0x28] sm:$0xff] %v290
    %307 = vst [vmem:[#allocation2 + $0x30] sm:$0xff] %v291
    %308 = vst [vmem:[#allocation2 + $0x38] sm:$0xff] %v292
    %309 = vst [vmem:[#allocation2 + $0x40] sm:$0xff] %v293
    %310 = vst [vmem:[#allocation2 + $0x48] sm:$0xff] %v294
    %311 = vst [vmem:[#allocation2 + $0x50] sm:$0xff] %v295
    %312 = vst [vmem:[#allocation2 + $0x58] sm:$0xff] %v296
    %313 = vst [vmem:[#allocation2 + $0x60] sm:$0xff] %v297
    %314 = vst [vmem:[#allocation2 + $0x68] sm:$0xff] %v298
    %315 = vst [vmem:[#allocation2 + $0x70] sm:$0xff] %v299
    %316 = vst [vmem:[#allocation2 + $0x78] sm:$0xff] %v300
    %v317 = vld [vmem:[#allocation3] sm:$0x1]
    %v318 = vrot.slane %v42, 4
    %v319 = vadd.f32 %v42, %v318
    %v320 = vrot.slane %v319, 2
    %v321 = vadd.f32 %v319, %v320
    %v322 = vrot.slane %v321, 1
    %v323 = vadd.f32 %v321, %v322
    %v324 = vadd.f32 %v317, %v323
    %325 = vst [vmem:[#allocation3] sm:$0x1] %v324
    // Predicated region
    $region14: #{tpu_custom_call.1} parent=1 // pred_check
      %p326 = pneg %p21
    $region15: #{tpu_custom_call.1} parent=1 // pred_check_branch
      %328 = sbr.rel (%p326) target = $region17
    $region16: #{tpu_custom_call.1} parent=1 // pred_region
      %v329 = vld [vmem:[#allocation2] sm:$0xff]
      %v330 = vld [vmem:[#allocation2 + $0x8] sm:$0xff]
      %v331 = vld [vmem:[#allocation2 + $0x10] sm:$0xff]
      %v332 = vld [vmem:[#allocation2 + $0x18] sm:$0xff]
      %v333 = vld [vmem:[#allocation2 + $0x20] sm:$0xff]
      %v334 = vld [vmem:[#allocation2 + $0x28] sm:$0xff]
      %v335 = vld [vmem:[#allocation2 + $0x30] sm:$0xff]
      %v336 = vld [vmem:[#allocation2 + $0x38] sm:$0xff]
      %v337 = vld [vmem:[#allocation2 + $0x40] sm:$0xff]
      %v338 = vld [vmem:[#allocation2 + $0x48] sm:$0xff]
      %v339 = vld [vmem:[#allocation2 + $0x50] sm:$0xff]
      %v340 = vld [vmem:[#allocation2 + $0x58] sm:$0xff]
      %v341 = vld [vmem:[#allocation2 + $0x60] sm:$0xff]
      %v342 = vld [vmem:[#allocation2 + $0x68] sm:$0xff]
      %v343 = vld [vmem:[#allocation2 + $0x70] sm:$0xff]
      %v344 = vld [vmem:[#allocation2 + $0x78] sm:$0xff]
      %v345 = vld [vmem:[#allocation3] sm:$0x1]
      %346 = vxpose.xlu0.b32.start [1/16] %v345, 128
      %347 = vxpose.xlu0.b32.cont [2/16] 0.0, 128
      %348 = vxpose.xlu0.b32.cont [3/16] 0.0, 128
      %349 = vxpose.xlu0.b32.cont [4/16] 0.0, 128
      %350 = vxpose.xlu0.b32.cont [5/16] 0.0, 128
      %351 = vxpose.xlu0.b32.cont [6/16] 0.0, 128
      %352 = vxpose.xlu0.b32.cont [7/16] 0.0, 128
      %353 = vxpose.xlu0.b32.cont [8/16] 0.0, 128
      %354 = vxpose.xlu0.b32.cont [9/16] 0.0, 128
      %355 = vxpose.xlu0.b32.cont [10/16] 0.0, 128
      %356 = vxpose.xlu0.b32.cont [11/16] 0.0, 128
      %357 = vxpose.xlu0.b32.cont [12/16] 0.0, 128
      %358 = vxpose.xlu0.b32.cont [13/16] 0.0, 128
      %359 = vxpose.xlu0.b32.cont [14/16] 0.0, 128
      %360 = vxpose.xlu0.b32.cont [15/16] 0.0, 128
      %361 = vxpose.xlu0.b32.end [16/16] 0.0, 128
      %v362 = vpop.trf.xlu0
      %v363 = vpop.trf.xlu0
      %v364 = vpop.trf.xlu0
      %v365 = vpop.trf.xlu0
      %v366 = vpop.trf.xlu0
      %v367 = vpop.trf.xlu0
      %v368 = vpop.trf.xlu0
      %v369 = vpop.trf.xlu0
      %v370 = vpop.trf.xlu0
      %v371 = vpop.trf.xlu0
      %v372 = vpop.trf.xlu0
      %v373 = vpop.trf.xlu0
      %v374 = vpop.trf.xlu0
      %v375 = vpop.trf.xlu0
      %v376 = vpop.trf.xlu0
      %v377 = vpop.trf.xlu0
      %vm378 = vcmask 7168
      %v380 = vsel %vm378, %v362, 0
      %v383 = vsel %vm378, %v363, 0
      %v386 = vsel %vm378, %v364, 0
      %v389 = vsel %vm378, %v365, 0
      %v392 = vsel %vm378, %v366, 0
      %v395 = vsel %vm378, %v367, 0
      %v398 = vsel %vm378, %v368, 0
      %v401 = vsel %vm378, %v369, 0
      %v404 = vsel %vm378, %v370, 0
      %v407 = vsel %vm378, %v371, 0
      %v410 = vsel %vm378, %v372, 0
      %v413 = vsel %vm378, %v373, 0
      %v416 = vsel %vm378, %v374, 0
      %v419 = vsel %vm378, %v375, 0
      %v422 = vsel %vm378, %v376, 0
      %v425 = vsel %vm378, %v377, 0
      %vm427 = vcmask 1040384
      %v429 = vsel %vm427, %v345, 0
      %431 = vmatprep.subr.mxu0 0.0
      %432 = vmatpush1.msra.mxu0 %v429
      %433 = vmatprep.subr.mxu0 0.0
      %434 = vmatpush1.msra.mxu0 0.0
      %435 = vmatprep.subr.mxu0 0.0
      %436 = vmatpush1.msra.mxu0 0.0
      %437 = vmatprep.subr.mxu0 0.0
      %438 = vmatpush1.msra.mxu0 0.0
      %439 = vmatprep.subr.mxu0 0.0
      %440 = vmatpush1.msra.mxu0 0.0
      %441 = vmatprep.subr.mxu0 0.0
      %442 = vmatpush1.msra.mxu0 0.0
      %443 = vmatprep.subr.mxu0 0.0
      %444 = vmatpush1.msra.mxu0 0.0
      %445 = vmatprep.subr.mxu0 0.0
      %446 = vmatpush1.msra.mxu0 0.0
      %447 = vmatprep.subr.mxu0 0.0
      %448 = vmatpush1.msra.mxu0 0.0
      %449 = vmatprep.subr.mxu0 0.0
      %450 = vmatpush1.msra.mxu0 0.0
      %451 = vmatprep.subr.mxu0 0.0
      %452 = vmatpush1.msra.mxu0 0.0
      %453 = vmatprep.subr.mxu0 0.0
      %454 = vmatpush1.msra.mxu0 0.0
      %455 = vmatprep.subr.mxu0 0.0
      %456 = vmatpush1.msra.mxu0 0.0
      %457 = vmatprep.subr.mxu0 0.0
      %458 = vmatpush1.msra.mxu0 0.0
      %459 = vmatprep.subr.mxu0 0.0
      %460 = vmatpush1.msra.mxu0 0.0
      %461 = vmatprep.subr.mxu0 0.0
      %462 = vmatpush1.msra.mxu0 0.0
      %463 = vmatprep.subr.mxu0 0.0
      %464 = vmatpush1.msra.mxu0 0.0
      %465 = vmatprep.subr.mxu0 0.0
      %466 = vmatpush1.msra.mxu0 0.0
      %467 = vmatprep.subr.mxu0 0.0
      %468 = vmatpush1.msra.mxu0 0.0
      %469 = vmatprep.subr.mxu0 0.0
      %470 = vmatpush1.msra.mxu0 0.0
      %471 = vmatprep.subr.mxu0 0.0
      %472 = vmatpush1.msra.mxu0 0.0
      %473 = vmatprep.subr.mxu0 0.0
      %474 = vmatpush1.msra.mxu0 0.0
      %475 = vmatprep.subr.mxu0 0.0
      %476 = vmatpush1.msra.mxu0 0.0
      %477 = vmatprep.subr.mxu0 0.0
      %478 = vmatpush1.msra.mxu0 0.0
      %479 = vmatprep.subr.mxu0 0.0
      %480 = vmatpush1.msra.mxu0 0.0
      %481 = vmatprep.subr.mxu0 0.0
      %482 = vmatpush1.msra.mxu0 0.0
      %483 = vmatprep.subr.mxu0 0.0
      %484 = vmatpush1.msra.mxu0 0.0
      %485 = vmatprep.subr.mxu0 0.0
      %486 = vmatpush1.msra.mxu0 0.0
      %487 = vmatprep.subr.mxu0 0.0
      %488 = vmatpush1.msra.mxu0 0.0
      %489 = vmatprep.subr.mxu0 0.0
      %490 = vmatpush1.msra.mxu0 0.0
      %491 = vmatprep.subr.mxu0 0.0
      %492 = vmatpush1.msra.mxu0 0.0
      %493 = vmatprep.subr.mxu0 0.0
      %494 = vmatpush1.msra.mxu0 0.0
      %495 = vmatprep.mubr.f32.mxu0 0.0
      %496 = vmatmul.mubr.f32.gmra.mrb[0].mxu0 %v380
      %v497 = vpop.f32.mrb[0].mxu0
      %v498 = vadd.f32 0.0, %v497
      %v499 = vpop.f32.mrb[0].mxu0
      %500 = vmatprep.mubr.f32.mxu0 0.0
      %501 = vmatmul.mubr.f32.gmra.mrb[0].mxu0 %v383
      %v502 = vpop.f32.mrb[0].mxu0
      %v503 = vadd.f32 0.0, %v502
      %v504 = vpop.f32.mrb[0].mxu0
      %505 = vmatprep.mubr.f32.mxu0 0.0
      %506 = vmatmul.mubr.f32.gmra.mrb[0].mxu0 %v386
      %v507 = vpop.f32.mrb[0].mxu0
      %v508 = vadd.f32 0.0, %v507
      %v509 = vpop.f32.mrb[0].mxu0
      %510 = vmatprep.mubr.f32.mxu0 0.0
      %511 = vmatmul.mubr.f32.gmra.mrb[0].mxu0 %v389
      %v512 = vpop.f32.mrb[0].mxu0
      %v513 = vadd.f32 0.0, %v512
      %v514 = vpop.f32.mrb[0].mxu0
      %515 = vmatprep.mubr.f32.mxu0 0.0
      %516 = vmatmul.mubr.f32.gmra.mrb[0].mxu0 %v392
      %v517 = vpop.f32.mrb[0].mxu0
      %v518 = vadd.f32 0.0, %v517
      %v519 = vpop.f32.mrb[0].mxu0
      %520 = vmatprep.mubr.f32.mxu0 0.0
      %521 = vmatmul.mubr.f32.gmra.mrb[0].mxu0 %v395
      %v522 = vpop.f32.mrb[0].mxu0
      %v523 = vadd.f32 0.0, %v522
      %v524 = vpop.f32.mrb[0].mxu0
      %525 = vmatprep.mubr.f32.mxu0 0.0
      %526 = vmatmul.mubr.f32.gmra.mrb[0].mxu0 %v398
      %v527 = vpop.f32.mrb[0].mxu0
      %v528 = vadd.f32 0.0, %v527
      %v529 = vpop.f32.mrb[0].mxu0
      %530 = vmatprep.mubr.f32.mxu0 0.0
      %531 = vmatmul.mubr.f32.gmra.mrb[0].mxu0 %v401
      %v532 = vpop.f32.mrb[0].mxu0
      %v533 = vadd.f32 0.0, %v532
      %v534 = vpop.f32.mrb[0].mxu0
      %535 = vmatprep.mubr.f32.mxu0 0.0
      %536 = vmatmul.mubr.f32.gmra.mrb[0].mxu0 %v404
      %v537 = vpop.f32.mrb[0].mxu0
      %v538 = vadd.f32 0.0, %v537
      %v539 = vpop.f32.mrb[0].mxu0
      %540 = vmatprep.mubr.f32.mxu0 0.0
      %541 = vmatmul.mubr.f32.gmra.mrb[0].mxu0 %v407
      %v542 = vpop.f32.mrb[0].mxu0
      %v543 = vadd.f32 0.0, %v542
      %v544 = vpop.f32.mrb[0].mxu0
      %545 = vmatprep.mubr.f32.mxu0 0.0
      %546 = vmatmul.mubr.f32.gmra.mrb[0].mxu0 %v410
      %v547 = vpop.f32.mrb[0].mxu0
      %v548 = vadd.f32 0.0, %v547
      %v549 = vpop.f32.mrb[0].mxu0
      %550 = vmatprep.mubr.f32.mxu0 0.0
      %551 = vmatmul.mubr.f32.gmra.mrb[0].mxu0 %v413
      %v552 = vpop.f32.mrb[0].mxu0
      %v553 = vadd.f32 0.0, %v552
      %v554 = vpop.f32.mrb[0].mxu0
      %555 = vmatprep.mubr.f32.mxu0 0.0
      %556 = vmatmul.mubr.f32.gmra.mrb[0].mxu0 %v416
      %v557 = vpop.f32.mrb[0].mxu0
      %v558 = vadd.f32 0.0, %v557
      %v559 = vpop.f32.mrb[0].mxu0
      %560 = vmatprep.mubr.f32.mxu0 0.0
      %561 = vmatmul.mubr.f32.gmra.mrb[0].mxu0 %v419
      %v562 = vpop.f32.mrb[0].mxu0
      %v563 = vadd.f32 0.0, %v562
      %v564 = vpop.f32.mrb[0].mxu0
      %565 = vmatprep.mubr.f32.mxu0 0.0
      %566 = vmatmul.mubr.f32.gmra.mrb[0].mxu0 %v422
      %v567 = vpop.f32.mrb[0].mxu0
      %v568 = vadd.f32 0.0, %v567
      %v569 = vpop.f32.mrb[0].mxu0
      %570 = vmatprep.mubr.f32.mxu0 0.0
      %571 = vmatmul.mubr.f32.gmra.mrb[0].mxu0 %v425
      %v572 = vpop.f32.mrb[0].mxu0
      %v573 = vadd.f32 0.0, %v572
      %v574 = vpop.f32.mrb[0].mxu0
      %575 = vdwg.mxu0
      %v576 = vmul.f32 %v498, 0.125
      %v577 = vmul.f32 %v503, 0.125
      %v578 = vmul.f32 %v508, 0.125
      %v579 = vmul.f32 %v513, 0.125
      %v580 = vmul.f32 %v518, 0.125
      %v581 = vmul.f32 %v523, 0.125
      %v582 = vmul.f32 %v528, 0.125
      %v583 = vmul.f32 %v533, 0.125
      %v584 = vmul.f32 %v538, 0.125
      %v585 = vmul.f32 %v543, 0.125
      %v586 = vmul.f32 %v548, 0.125
      %v587 = vmul.f32 %v553, 0.125
      %v588 = vmul.f32 %v558, 0.125
      %v589 = vmul.f32 %v563, 0.125
      %v590 = vmul.f32 %v568, 0.125
      %v591 = vmul.f32 %v573, 0.125
      %v592 = vsub.f32 %v329, %v576
      %v593 = vsub.f32 %v330, %v577
      %v594 = vsub.f32 %v331, %v578
      %v595 = vsub.f32 %v332, %v579
      %v596 = vsub.f32 %v333, %v580
      %v597 = vsub.f32 %v334, %v581
      %v598 = vsub.f32 %v335, %v582
      %v599 = vsub.f32 %v336, %v583
      %v600 = vsub.f32 %v337, %v584
      %v601 = vsub.f32 %v338, %v585
      %v602 = vsub.f32 %v339, %v586
      %v603 = vsub.f32 %v340, %v587
      %v604 = vsub.f32 %v341, %v588
      %v605 = vsub.f32 %v342, %v589
      %v606 = vsub.f32 %v343, %v590
      %v607 = vsub.f32 %v344, %v591
      %v608 = vlaneseq
      %v609 = vshrl.u32 %v608, 7
      %v610 = vadd.s32 %v609, 8
      %v611 = vadd.s32 %v609, 16
      %v612 = vadd.s32 %v609, 24
      %v613 = vadd.s32 %v609, 32
      %v614 = vadd.s32 %v609, 40
      %v615 = vadd.s32 %v609, 48
      %v616 = vadd.s32 %v609, 56
      %v617 = vadd.s32 %v609, 64
      %v618 = vadd.s32 %v609, 72
      %v619 = vadd.s32 %v609, 80
      %v620 = vadd.s32 %v609, 88
      %v621 = vadd.s32 %v609, 96
      %v622 = vadd.s32 %v609, 104
      %v623 = vadd.s32 %v609, 112
      %v624 = vadd.s32 %v609, 120
      %v625 = vlaneseq
      %v626 = vand.u32 %v625, 127
      %vm627 = vcmp.eq.s32.totalorder %v609, %v626
      %vm628 = vcmp.eq.s32.totalorder %v610, %v626
      %vm629 = vcmp.eq.s32.totalorder %v611, %v626
      %vm630 = vcmp.eq.s32.totalorder %v612, %v626
      %vm631 = vcmp.eq.s32.totalorder %v613, %v626
      %vm632 = vcmp.eq.s32.totalorder %v614, %v626
      %vm633 = vcmp.eq.s32.totalorder %v615, %v626
      %vm634 = vcmp.eq.s32.totalorder %v616, %v626
      %vm635 = vcmp.eq.s32.totalorder %v617, %v626
      %vm636 = vcmp.eq.s32.totalorder %v618, %v626
      %vm637 = vcmp.eq.s32.totalorder %v619, %v626
      %vm638 = vcmp.eq.s32.totalorder %v620, %v626
      %vm639 = vcmp.eq.s32.totalorder %v621, %v626
      %vm640 = vcmp.eq.s32.totalorder %v622, %v626
      %vm641 = vcmp.eq.s32.totalorder %v623, %v626
      %vm642 = vcmp.eq.s32.totalorder %v624, %v626
      %v643 = vsel %vm627, %v592, 0.0
      %v644 = vsel %vm628, %v593, 0.0
      %v645 = vsel %vm629, %v594, 0.0
      %v646 = vsel %vm630, %v595, 0.0
      %v647 = vsel %vm631, %v596, 0.0
      %v648 = vsel %vm632, %v597, 0.0
      %v649 = vsel %vm633, %v598, 0.0
      %v650 = vsel %vm634, %v599, 0.0
      %v651 = vsel %vm635, %v600, 0.0
      %v652 = vsel %vm636, %v601, 0.0
      %v653 = vsel %vm637, %v602, 0.0
      %v654 = vsel %vm638, %v603, 0.0
      %v655 = vsel %vm639, %v604, 0.0
      %v656 = vsel %vm640, %v605, 0.0
      %v657 = vsel %vm641, %v606, 0.0
      %v658 = vsel %vm642, %v607, 0.0
      %v659 = vadd.f32 %v643, %v644
      %v660 = vadd.f32 %v659, %v645
      %v661 = vadd.f32 %v660, %v646
      %v662 = vadd.f32 %v661, %v647
      %v663 = vadd.f32 %v662, %v648
      %v664 = vadd.f32 %v663, %v649
      %v665 = vadd.f32 %v664, %v650
      %v666 = vadd.f32 %v665, %v651
      %v667 = vadd.f32 %v666, %v652
      %v668 = vadd.f32 %v667, %v653
      %v669 = vadd.f32 %v668, %v654
      %v670 = vadd.f32 %v669, %v655
      %v671 = vadd.f32 %v670, %v656
      %v672 = vadd.f32 %v671, %v657
      %v673 = vadd.f32 %v672, %v658
      %v674 = vrot.slane %v673, 4
      %v675 = vadd.f32 %v673, %v674
      %v676 = vrot.slane %v675, 2
      %v677 = vadd.f32 %v675, %v676
      %v678 = vrot.slane %v677, 1
      %v679 = vadd.f32 %v677, %v678
      %v680 = vmax.f32 %v679, 0.0
      %v681 = vmul.f32 %v680, 0.14285715
      %v682 = vadd.f32 %v681, 1e-08
      %v683 = vrsqrt.pop %v682
      %684 = vxpose.xlu0.b32.start [1/16] %v683, 128
      %685 = vxpose.xlu0.b32.cont [2/16] 0.0, 128
      %686 = vxpose.xlu0.b32.cont [3/16] 0.0, 128
      %687 = vxpose.xlu0.b32.cont [4/16] 0.0, 128
      %688 = vxpose.xlu0.b32.cont [5/16] 0.0, 128
      %689 = vxpose.xlu0.b32.cont [6/16] 0.0, 128
      %690 = vxpose.xlu0.b32.cont [7/16] 0.0, 128
      %691 = vxpose.xlu0.b32.cont [8/16] 0.0, 128
      %692 = vxpose.xlu0.b32.cont [9/16] 0.0, 128
      %693 = vxpose.xlu0.b32.cont [10/16] 0.0, 128
      %694 = vxpose.xlu0.b32.cont [11/16] 0.0, 128
      %695 = vxpose.xlu0.b32.cont [12/16] 0.0, 128
      %696 = vxpose.xlu0.b32.cont [13/16] 0.0, 128
      %697 = vxpose.xlu0.b32.cont [14/16] 0.0, 128
      %698 = vxpose.xlu0.b32.cont [15/16] 0.0, 128
      %699 = vxpose.xlu0.b32.end [16/16] 0.0, 128
      %v700 = vpop.trf.xlu0
      %v701 = vpop.trf.xlu0
      %v702 = vpop.trf.xlu0
      %v703 = vpop.trf.xlu0
      %v704 = vpop.trf.xlu0
      %v705 = vpop.trf.xlu0
      %v706 = vpop.trf.xlu0
      %v707 = vpop.trf.xlu0
      %v708 = vpop.trf.xlu0
      %v709 = vpop.trf.xlu0
      %v710 = vpop.trf.xlu0
      %v711 = vpop.trf.xlu0
      %v712 = vpop.trf.xlu0
      %v713 = vpop.trf.xlu0
      %v714 = vpop.trf.xlu0
      %v715 = vpop.trf.xlu0
      %v717 = vsel %vm378, %v700, 0
      %v720 = vsel %vm378, %v701, 0
      %v723 = vsel %vm378, %v702, 0
      %v726 = vsel %vm378, %v703, 0
      %v729 = vsel %vm378, %v704, 0
      %v732 = vsel %vm378, %v705, 0
      %v735 = vsel %vm378, %v706, 0
      %v738 = vsel %vm378, %v707, 0
      %v741 = vsel %vm378, %v708, 0
      %v744 = vsel %vm378, %v709, 0
      %v747 = vsel %vm378, %v710, 0
      %v750 = vsel %vm378, %v711, 0
      %v753 = vsel %vm378, %v712, 0
      %v756 = vsel %vm378, %v713, 0
      %v759 = vsel %vm378, %v714, 0
      %v762 = vsel %vm378, %v715, 0
      %v765 = vsel %vm427, %v683, 0
      %767 = vmatprep.subr.mxu0 0.0
      %768 = vmatpush1.msra.mxu0 %v765
      %769 = vmatprep.subr.mxu0 0.0
      %770 = vmatpush1.msra.mxu0 0.0
      %771 = vmatprep.subr.mxu0 0.0
      %772 = vmatpush1.msra.mxu0 0.0
      %773 = vmatprep.subr.mxu0 0.0
      %774 = vmatpush1.msra.mxu0 0.0
      %775 = vmatprep.subr.mxu0 0.0
      %776 = vmatpush1.msra.mxu0 0.0
      %777 = vmatprep.subr.mxu0 0.0
      %778 = vmatpush1.msra.mxu0 0.0
      %779 = vmatprep.subr.mxu0 0.0
      %780 = vmatpush1.msra.mxu0 0.0
      %781 = vmatprep.subr.mxu0 0.0
      %782 = vmatpush1.msra.mxu0 0.0
      %783 = vmatprep.subr.mxu0 0.0
      %784 = vmatpush1.msra.mxu0 0.0
      %785 = vmatprep.subr.mxu0 0.0
      %786 = vmatpush1.msra.mxu0 0.0
      %787 = vmatprep.subr.mxu0 0.0
      %788 = vmatpush1.msra.mxu0 0.0
      %789 = vmatprep.subr.mxu0 0.0
      %790 = vmatpush1.msra.mxu0 0.0
      %791 = vmatprep.subr.mxu0 0.0
      %792 = vmatpush1.msra.mxu0 0.0
      %793 = vmatprep.subr.mxu0 0.0
      %794 = vmatpush1.msra.mxu0 0.0
      %795 = vmatprep.subr.mxu0 0.0
      %796 = vmatpush1.msra.mxu0 0.0
      %797 = vmatprep.subr.mxu0 0.0
      %798 = vmatpush1.msra.mxu0 0.0
      %799 = vmatprep.subr.mxu0 0.0
      %800 = vmatpush1.msra.mxu0 0.0
      %801 = vmatprep.subr.mxu0 0.0
      %802 = vmatpush1.msra.mxu0 0.0
      %803 = vmatprep.subr.mxu0 0.0
      %804 = vmatpush1.msra.mxu0 0.0
      %805 = vmatprep.subr.mxu0 0.0
      %806 = vmatpush1.msra.mxu0 0.0
      %807 = vmatprep.subr.mxu0 0.0
      %808 = vmatpush1.msra.mxu0 0.0
      %809 = vmatprep.subr.mxu0 0.0
      %810 = vmatpush1.msra.mxu0 0.0
      %811 = vmatprep.subr.mxu0 0.0
      %812 = vmatpush1.msra.mxu0 0.0
      %813 = vmatprep.subr.mxu0 0.0
      %814 = vmatpush1.msra.mxu0 0.0
      %815 = vmatprep.subr.mxu0 0.0
      %816 = vmatpush1.msra.mxu0 0.0
      %817 = vmatprep.subr.mxu0 0.0
      %818 = vmatpush1.msra.mxu0 0.0
      %819 = vmatprep.subr.mxu0 0.0
      %820 = vmatpush1.msra.mxu0 0.0
      %821 = vmatprep.subr.mxu0 0.0
      %822 = vmatpush1.msra.mxu0 0.0
      %823 = vmatprep.subr.mxu0 0.0
      %824 = vmatpush1.msra.mxu0 0.0
      %825 = vmatprep.subr.mxu0 0.0
      %826 = vmatpush1.msra.mxu0 0.0
      %827 = vmatprep.subr.mxu0 0.0
      %828 = vmatpush1.msra.mxu0 0.0
      %829 = vmatprep.subr.mxu0 0.0
      %830 = vmatpush1.msra.mxu0 0.0
      %831 = vmatprep.mubr.f32.mxu0 0.0
      %832 = vmatmul.mubr.f32.gmra.mrb[0].mxu0 %v717
      %v833 = vpop.f32.mrb[0].mxu0
      %v834 = vadd.f32 0.0, %v833
      %v835 = vpop.f32.mrb[0].mxu0
      %836 = vmatprep.mubr.f32.mxu0 0.0
      %837 = vmatmul.mubr.f32.gmra.mrb[0].mxu0 %v720
      %v838 = vpop.f32.mrb[0].mxu0
      %v839 = vadd.f32 0.0, %v838
      %v840 = vpop.f32.mrb[0].mxu0
      %841 = vmatprep.mubr.f32.mxu0 0.0
      %842 = vmatmul.mubr.f32.gmra.mrb[0].mxu0 %v723
      %v843 = vpop.f32.mrb[0].mxu0
      %v844 = vadd.f32 0.0, %v843
      %v845 = vpop.f32.mrb[0].mxu0
      %846 = vmatprep.mubr.f32.mxu0 0.0
      %847 = vmatmul.mubr.f32.gmra.mrb[0].mxu0 %v726
      %v848 = vpop.f32.mrb[0].mxu0
      %v849 = vadd.f32 0.0, %v848
      %v850 = vpop.f32.mrb[0].mxu0
      %851 = vmatprep.mubr.f32.mxu0 0.0
      %852 = vmatmul.mubr.f32.gmra.mrb[0].mxu0 %v729
      %v853 = vpop.f32.mrb[0].mxu0
      %v854 = vadd.f32 0.0, %v853
      %v855 = vpop.f32.mrb[0].mxu0
      %856 = vmatprep.mubr.f32.mxu0 0.0
      %857 = vmatmul.mubr.f32.gmra.mrb[0].mxu0 %v732
      %v858 = vpop.f32.mrb[0].mxu0
      %v859 = vadd.f32 0.0, %v858
      %v860 = vpop.f32.mrb[0].mxu0
      %861 = vmatprep.mubr.f32.mxu0 0.0
      %862 = vmatmul.mubr.f32.gmra.mrb[0].mxu0 %v735
      %v863 = vpop.f32.mrb[0].mxu0
      %v864 = vadd.f32 0.0, %v863
      %v865 = vpop.f32.mrb[0].mxu0
      %866 = vmatprep.mubr.f32.mxu0 0.0
      %867 = vmatmul.mubr.f32.gmra.mrb[0].mxu0 %v738
      %v868 = vpop.f32.mrb[0].mxu0
      %v869 = vadd.f32 0.0, %v868
      %v870 = vpop.f32.mrb[0].mxu0
      %871 = vmatprep.mubr.f32.mxu0 0.0
      %872 = vmatmul.mubr.f32.gmra.mrb[0].mxu0 %v741
      %v873 = vpop.f32.mrb[0].mxu0
      %v874 = vadd.f32 0.0, %v873
      %v875 = vpop.f32.mrb[0].mxu0
      %876 = vmatprep.mubr.f32.mxu0 0.0
      %877 = vmatmul.mubr.f32.gmra.mrb[0].mxu0 %v744
      %v878 = vpop.f32.mrb[0].mxu0
      %v879 = vadd.f32 0.0, %v878
      %v880 = vpop.f32.mrb[0].mxu0
      %881 = vmatprep.mubr.f32.mxu0 0.0
      %882 = vmatmul.mubr.f32.gmra.mrb[0].mxu0 %v747
      %v883 = vpop.f32.mrb[0].mxu0
      %v884 = vadd.f32 0.0, %v883
      %v885 = vpop.f32.mrb[0].mxu0
      %886 = vmatprep.mubr.f32.mxu0 0.0
      %887 = vmatmul.mubr.f32.gmra.mrb[0].mxu0 %v750
      %v888 = vpop.f32.mrb[0].mxu0
      %v889 = vadd.f32 0.0, %v888
      %v890 = vpop.f32.mrb[0].mxu0
      %891 = vmatprep.mubr.f32.mxu0 0.0
      %892 = vmatmul.mubr.f32.gmra.mrb[0].mxu0 %v753
      %v893 = vpop.f32.mrb[0].mxu0
      %v894 = vadd.f32 0.0, %v893
      %v895 = vpop.f32.mrb[0].mxu0
      %896 = vmatprep.mubr.f32.mxu0 0.0
      %897 = vmatmul.mubr.f32.gmra.mrb[0].mxu0 %v756
      %v898 = vpop.f32.mrb[0].mxu0
      %v899 = vadd.f32 0.0, %v898
      %v900 = vpop.f32.mrb[0].mxu0
      %901 = vmatprep.mubr.f32.mxu0 0.0
      %902 = vmatmul.mubr.f32.gmra.mrb[0].mxu0 %v759
      %v903 = vpop.f32.mrb[0].mxu0
      %v904 = vadd.f32 0.0, %v903
      %v905 = vpop.f32.mrb[0].mxu0
      %906 = vmatprep.mubr.f32.mxu0 0.0
      %907 = vmatmul.mubr.f32.gmra.mrb[0].mxu0 %v762
      %v908 = vpop.f32.mrb[0].mxu0
      %v909 = vadd.f32 0.0, %v908
      %v910 = vpop.f32.mrb[0].mxu0
      %911 = vdwg.mxu0
      %v912 = vmul.f32 %v592, %v834
      %v913 = vmul.f32 %v593, %v839
      %v914 = vmul.f32 %v594, %v844
      %v915 = vmul.f32 %v595, %v849
      %v916 = vmul.f32 %v596, %v854
      %v917 = vmul.f32 %v597, %v859
      %v918 = vmul.f32 %v598, %v864
      %v919 = vmul.f32 %v599, %v869
      %v920 = vmul.f32 %v600, %v874
      %v921 = vmul.f32 %v601, %v879
      %v922 = vmul.f32 %v602, %v884
      %v923 = vmul.f32 %v603, %v889
      %v924 = vmul.f32 %v604, %v894
      %v925 = vmul.f32 %v605, %v899
      %v926 = vmul.f32 %v606, %v904
      %v927 = vmul.f32 %v607, %v909
      %v928 = vmul.f32 %v912, %v912
      %v929 = vmul.f32 %v913, %v913
      %v930 = vmul.f32 %v914, %v914
      %v931 = vmul.f32 %v915, %v915
      %v932 = vmul.f32 %v916, %v916
      %v933 = vmul.f32 %v917, %v917
      %v934 = vmul.f32 %v918, %v918
      %v935 = vmul.f32 %v919, %v919
      %v936 = vmul.f32 %v920, %v920
      %v937 = vmul.f32 %v921, %v921
      %v938 = vmul.f32 %v922, %v922
      %v939 = vmul.f32 %v923, %v923
      %v940 = vmul.f32 %v924, %v924
      %v941 = vmul.f32 %v925, %v925
      %v942 = vmul.f32 %v926, %v926
      %v943 = vmul.f32 %v927, %v927
      %v944 = vadd.f32 %v928, %v929
      %v945 = vadd.f32 %v944, %v930
      %v946 = vadd.f32 %v945, %v931
      %v947 = vadd.f32 %v946, %v932
      %v948 = vadd.f32 %v947, %v933
      %v949 = vadd.f32 %v948, %v934
      %v950 = vadd.f32 %v949, %v935
      %v951 = vadd.f32 %v950, %v936
      %v952 = vadd.f32 %v951, %v937
      %v953 = vadd.f32 %v952, %v938
      %v954 = vadd.f32 %v953, %v939
      %v955 = vadd.f32 %v954, %v940
      %v956 = vadd.f32 %v955, %v941
      %v957 = vadd.f32 %v956, %v942
      %v958 = vadd.f32 %v957, %v943
      %959 = vadd.xlane.f32.xlu0 %v958
      %v960 = vpop.xlane.xlu0 %959
      %v961 = vrot.slane %v960, 4
      %v962 = vadd.f32 %v960, %v961
      %v963 = vrot.slane %v962, 2
      %v964 = vadd.f32 %v962, %v963
      %v965 = vrot.slane %v964, 1
      %v966 = vadd.f32 %v964, %v965
      %s967 = vtos %v966
      %v968 = vmul.f32 %v683, %v683
      %v969 = vmul.f32 %v680, %v968
      %v970 = vmul.f32 %v969, %v969
      %v971 = vsel %vm427, %v970, 0.0
      %972 = vadd.xlane.f32.xlu0 %v971
      %v973 = vpop.xlane.xlu0 %972
      %v974 = vrot.slane %v973, 4
      %v975 = vadd.f32 %v973, %v974
      %v976 = vrot.slane %v975, 2
      %v977 = vadd.f32 %v975, %v976
      %v978 = vrot.slane %v977, 1
      %v979 = vadd.f32 %v977, %v978
      %s980 = vtos %v979
      %s981 = ssub.f32 %s967, %s980
      %s982 = smul.f32 %s981, 0.00012600806
      %s983 = scalar_lea.smem [#allocation7], 0
      %984 = sst [smem:[%s983]] %s982
    $region17: #{tpu_custom_call.1} parent=1 // pred_fallthru
      _
    // Predicated region
    $region18: #{tpu_custom_call.1} parent=1 // pred_check
      _
    $region19: #{tpu_custom_call.1} parent=1 // pred_check_branch
      %986 = sbr.rel (0) target = $region21
    $region20: #{tpu_custom_call.1} parent=1 // pred_region
      %s988 = ssub.s32 16, 16
      %989 = vsyncadd [#allocation6], %s988
      %992 = dma.smem_to_hbm [#allocation7], 16, %s1, [#allocation6]
    $region21: #{tpu_custom_call.1} parent=1 // pred_fallthru
      _
    // Predicated region
    $region22: #{tpu_custom_call.1} parent=1 // pred_check
      _
    $region23: #{tpu_custom_call.1} parent=1 // pred_check_branch
      %994 = sbr.rel (0) target = $region25
    $region24: #{tpu_custom_call.1} parent=1 // pred_region
      %995 = dma.done [#allocation6], 16
    $region25: #{tpu_custom_call.1} parent=1 // pred_fallthru
      _
    %996 = sfence
    %997 = vsyncpa [#allocation5], 1
    %998 = vsyncpa [#allocation6], 1

</llo_original>
